<compile_context>
chip_gen: v7x
topology: tpu7x:2x2x1
jax: 0.10.0
libtpu: 0.0.40
codegen_flags: <defaults>
</compile_context>

<pallas_src>
import math
from functools import partial

import numpy as np
import jax
import jax.numpy as jnp
from jax.experimental import pallas as pl
from jax.experimental.pallas import tpu as pltpu

NEG_SLOPE = 0.01                                   # nn.LeakyReLU default negative slope
NUM_PARAMS = 5
NUM_VARS = NUM_PARAMS * (NUM_PARAMS + 1) // 2      # 15
VAR_EPS = 1e-12                                    # guards constant-input rows (torch would NaN)
LANE = 128

_ARBITRARY = pltpu.CompilerParams(dimension_semantics=("arbitrary",))


# ---------------- architecture (mirrors build_neural_network) ----------------
def build_architecture(data_shape):
    assert len(data_shape) == 2
    array_length = data_shape[-1]
    channels = 1
    convs = []
    while array_length > 1:
        out_channels = channels * 2
        convs.append((channels, out_channels))     # conv(ci, co, k=3, stride=(1,2), pad=1)
        channels = out_channels
        array_length = int(np.ceil(array_length / 2))
    return convs, channels


# ---------------- parameters (deterministic synthetic init) ----------------
def init_params(key, data_shape):
    convs, channels = build_architecture(data_shape)
    features_in = channels * data_shape[0]
    keys = iter(jax.random.split(key, 2 * len(convs) + 8))
    params = {"convs": []}
    for (ci, co) in convs:
        w = 0.1 * jax.random.normal(next(keys), (3, 3, ci, co), jnp.float32)   # HWIO
        b = 0.05 * jax.random.normal(next(keys), (co,), jnp.float32)
        params["convs"].append((w, b))

    def lin(fin, fout, scale=0.05):
        return (scale * jax.random.normal(next(keys), (fin, fout), jnp.float32),
                scale * jax.random.normal(next(keys), (fout,), jnp.float32))

    params["mu_w1"], params["mu_b1"] = lin(features_in, 256)
    params["mu_w2"], params["mu_b2"] = lin(256, NUM_PARAMS)
    params["sg_w1"], params["sg_b1"] = lin(features_in, 256)
    params["sg_w2"], params["sg_b2"] = lin(256, NUM_VARS)
    return params


# ---------------- one-time weight folding + slab packing (outside the hot path) ----------------
def _conv_im2col_indicator(H, W, stride_w=2):
    """0/1 tensor T[h*W+w, ho*W_out+wo, kh, kw] for a 3x3, stride (1, stride_w), pad 1 conv."""
    W_out = -(-W // stride_w)
    T = np.zeros((H * W, H * W_out, 3, 3), np.float32)
    for ho in range(H):
        for wo in range(W_out):
            for kh in range(3):
                for kw in range(3):
                    h = ho + kh - 1
                    w = wo * stride_w + kw - 1
                    if 0 <= h < H and 0 <= w < W:
                        T[h * W + w, ho * W_out + wo, kh, kw] = 1.0
    return T, W_out


def pack_params(params, data_shape):
    """Fold convs into dense matrices over flat NHWC activations, fold the Flatten
    permutation into the last conv, fuse the two heads, and pack EVERYTHING into one
    tile-aligned bf16 slab.  Runs once, outside the hot path."""
    H, W = data_shape
    conv_d, conv_b = [], []
    cur_w, ci = W, 1
    for (w, b) in params["convs"]:
        co = w.shape[-1]
        T, w_out = _conv_im2col_indicator(H, cur_w)
        # D[(h*W+w)*Ci+ci, (ho*W_out+wo)*Co+co] = sum_{kh,kw} T[...] * w[kh,kw,ci,co]
        D = jnp.einsum("pqkl,klio->piqo", jnp.asarray(T), w)
        D = D.reshape(H * cur_w * ci, H * w_out * co)
        conv_d.append(D)
        conv_b.append(jnp.tile(b, H * w_out))       # bias in the flat (h, w, c) layout
        cur_w, ci = w_out, co

    # fold NHWC-flat -> PyTorch NCHW Flatten order into the last conv layer
    c = ci
    old_idx = np.arange(H * cur_w * c).reshape(H, cur_w, c)   # (h, w, c) -> old flat index
    perm = old_idx.transpose(2, 0, 1).reshape(-1)             # new order is (c, h, w)
    conv_d[-1] = conv_d[-1][:, perm]
    conv_b[-1] = conv_b[-1][perm]

    nc = len(conv_d)
    hd = params["mu_w1"].shape[1]                    # 256
    hd2 = 2 * hd                                     # 512 (fused heads)
    n_out = NUM_PARAMS + NUM_VARS                    # 20
    f_in = conv_d[0].shape[0]                        # H*W = 64

    # layout assumptions (hold for the (8, 8) data_shape used by this script)
    assert f_in % 8 == 0 and f_in <= LANE
    assert all(D.shape[0] <= LANE and D.shape[1] <= LANE for D in conv_d)
    assert hd2 % LANE == 0 and n_out <= LANE

    slab_w = max(LANE * nc, hd2, LANE)               # 512
    r_w1 = LANE                                      # conv region: rows [0, 128)
    r_w2 = 2 * LANE                                  # w1 region:   rows [128, 256)
    r_bias = r_w2 + LANE                             # w2 region:   rows [256, 384)
    r_total = r_bias + 16                            # bias block:  rows [384, 400)

    slab = jnp.zeros((r_total, slab_w), jnp.float32)
    # conv blocks: one 128-wide lane slot per layer, zero-padded to [128, 128]
    for l, (D, bv) in enumerate(zip(conv_d, conv_b)):
        fi, fo = D.shape
        slab = slab.at[0:fi, LANE * l:LANE * l + fo].set(D)
        slab = slab.at[r_bias + l, 0:fo].set(bv)
    # fused first-layer head: concat mu/sigma -> [f_in, 512]
    w1 = jnp.concatenate([params["mu_w1"], params["sg_w1"]], axis=1)
    b1 = jnp.concatenate([params["mu_b1"], params["sg_b1"]])
    slab = slab.at[r_w1:r_w1 + f_in, 0:hd2].set(w1)
    slab = slab.at[r_bias + nc, 0:hd2].set(b1)
    # fused block-diagonal second layer [512, 20], output-padded to 128 lanes and stored
    # as hd2/128 row-chunks laid side by side (each [128, 128]) -> no wasted slab columns
    w2 = jnp.zeros((hd2, LANE), jnp.float32)
    w2 = w2.at[:hd, :NUM_PARAMS].set(params["mu_w2"])
    w2 = w2.at[hd:, NUM_PARAMS:n_out].set(params["sg_w2"])
    for j in range(hd2 // LANE):
        slab = slab.at[r_w2:r_w2 + LANE, LANE * j:LANE * (j + 1)].set(
            w2[LANE * j:LANE * (j + 1), :])
    b2 = jnp.concatenate([params["mu_b2"], params["sg_b2"]])
    slab = slab.at[r_bias + nc + 1, 0:n_out].set(b2)
    # mask of Cholesky-diagonal lanes in the fused [means(5) | tril(15)] output
    tr, tc = np.tril_indices(NUM_PARAMS)             # same order as torch.tril_indices
    mask = np.zeros((LANE,), np.float32)
    mask[NUM_PARAMS + np.nonzero(tr == tc)[0]] = 1.0
    slab = slab.at[r_bias + nc + 2, 0:LANE].set(jnp.asarray(mask))

    meta = dict(num_convs=nc, f_in=f_in, hd2=hd2,
                r_w1=r_w1, r_w2=r_w2, r_bias=r_bias, n_out=n_out)
    return {"slab": slab.astype(jnp.bfloat16), "meta": meta}


# ---------------- the single fused Pallas kernel ----------------
def _fused_forward_kernel(x_ref, slab_ref, out_ref, *, meta):
    nc, f_in, hd2 = meta["num_convs"], meta["f_in"], meta["hd2"]
    r_w1, r_w2, r_bias = meta["r_w1"], meta["r_w2"], meta["r_bias"]

    # all biases + mask: one tile-aligned load, rows value-sliced afterwards (f32)
    bias_blk = slab_ref[r_bias:r_bias + 16, :].astype(jnp.float32)

    # (1) per-sample standardization (unbiased, like torch.std) + clamp [-5, 5]  (f32)
    x = x_ref[...]
    n = x.shape[-1]
    mean = jnp.sum(x, axis=-1, keepdims=True) * (1.0 / n)
    d = x - mean
    var = jnp.sum(d * d, axis=-1, keepdims=True) * (1.0 / (n - 1))
    h = jnp.clip(d * jax.lax.rsqrt(var + VAR_EPS), -5.0, 5.0)

    def leaky(y):                                    # one VALU op
        return jnp.maximum(y, NEG_SLOPE * y)

    # (2) conv stack: each layer pre-folded into a dense bf16 matmul, f32 accumulate.
    #     Activations live in 128 lanes; the unused upper lanes stay exactly zero.
    for l in range(nc):
        k = f_in if l == 0 else LANE
        w = slab_ref[0:k, LANE * l:LANE * (l + 1)]
        y = jnp.dot(h.astype(jnp.bfloat16), w, preferred_element_type=jnp.float32)
        h = leaky(y + bias_blk[l:l + 1, 0:LANE])
    # h = Flatten(cnn(x)) in PyTorch NCHW order, real features in lanes [0, 64)

    # (3) fused mu/sigma heads: Linear(64->512) -> LeakyReLU -> block-diag Linear(512->128pad)
    w1 = slab_ref[r_w1:r_w1 + LANE, 0:hd2]
    y1 = jnp.dot(h.astype(jnp.bfloat16), w1, preferred_element_type=jnp.float32)
    h1 = leaky(y1 + bias_blk[nc:nc + 1, 0:hd2]).astype(jnp.bfloat16)

    out = jnp.broadcast_to(bias_blk[nc + 1:nc + 2, 0:LANE], out_ref.shape)
    for j in range(hd2 // LANE):                     # w2 stored as [128,128] chunks
        out = out + jnp.dot(h1[:, LANE * j:LANE * (j + 1)],
                            slab_ref[r_w2:r_w2 + LANE, LANE * j:LANE * (j + 1)],
                            preferred_element_type=jnp.float32)

    # (4) exp(v + e) only on the Cholesky-diagonal lanes (sigma head)
    m = jnp.broadcast_to(bias_blk[nc + 2:nc + 3, 0:LANE], out.shape)
    out_ref[...] = jnp.where(m > 0.5, jnp.exp(out + math.e), out)


def fused_forward(x2d, packed):
    slab, meta = packed["slab"], packed["meta"]
    bp, f_in = x2d.shape
    return pl.pallas_call(
        partial(_fused_forward_kernel, meta=meta),
        out_shape=jax.ShapeDtypeStruct((bp, LANE), jnp.float32),
        grid=(1,),
        in_specs=[pl.BlockSpec((bp, f_in), lambda i: (0, 0)),
                  pl.BlockSpec(slab.shape, lambda i: (0, 0))],
        out_specs=pl.BlockSpec((bp, LANE), lambda i: (0, 0)),
        compiler_params=_ARBITRARY,
    )(x2d, slab)


# ---------------- forward (TimeFrequencyCNN.forward) ----------------
def time_frequency_cnn_forward(packed, x_nchw):
    B, C, H, W = x_nchw.shape
    assert C == 1
    x2 = x_nchw.reshape(B, H * W).astype(jnp.float32)
    bp = max(8, ((B + 7) // 8) * 8)                  # sublane-align the batch
    xp = jnp.zeros((bp, H * W), jnp.float32).at[:B].set(x2)
    out = fused_forward(xp, packed)[:B, :NUM_PARAMS + NUM_VARS]   # [B, 20]
    means = out[:, :NUM_PARAMS]
    variances = out[:, NUM_PARAMS:]
    p = NUM_PARAMS
    tr, tc = np.tril_indices(p)
    L = jnp.zeros((B, p, p), jnp.float32).at[:, tr, tc].set(variances)
    # TODO(synk): PyTorch returns torch.distributions.MultivariateNormal(means, scale_tril=L);
    # here we return its (mean, scale_tril) parameterization as plain arrays.
    return means, L


# ---------------- pure-JAX reference (unfused, f32) for correctness ----------------
def reference_forward(params, x_nchw):
    B = x_nchw.shape[0]
    x = x_nchw.reshape(B, -1).astype(jnp.float32)
    n = x.shape[-1]
    mean = x.mean(-1, keepdims=True)
    d = x - mean
    var = jnp.sum(d * d, -1, keepdims=True) / (n - 1)
    h = jnp.clip(d * jax.lax.rsqrt(var + VAR_EPS), -5.0, 5.0).reshape(x_nchw.shape)
    for (w, b) in params["convs"]:
        h = jax.lax.conv_general_dilated(
            h, w, window_strides=(1, 2), padding=((1, 1), (1, 1)),
            dimension_numbers=("NCHW", "HWIO", "NCHW"),
            precision=jax.lax.Precision.HIGHEST)
        h = h + b.reshape(1, -1, 1, 1)
        h = jnp.where(h >= 0.0, h, NEG_SLOPE * h)
    z = h.reshape(B, -1)                              # NCHW flatten order (c, h, w)

    def head(z, w1, b1, w2, b2):
        hh = jnp.dot(z, w1, precision=jax.lax.Precision.HIGHEST) + b1
        hh = jnp.where(hh >= 0.0, hh, NEG_SLOPE * hh)
        return jnp.dot(hh, w2, precision=jax.lax.Precision.HIGHEST) + b2

    means = head(z, params["mu_w1"], params["mu_b1"], params["mu_w2"], params["mu_b2"])
    vars_ = head(z, params["sg_w1"], params["sg_b1"], params["sg_w2"], params["sg_b2"])
    p = NUM_PARAMS
    tr, tc = np.tril_indices(p)
    diag = jnp.asarray(tr == tc)[None, :]
    vars_ = jnp.where(diag, jnp.exp(vars_ + math.e), vars_)
    L = jnp.zeros((B, p, p), jnp.float32).at[:, tr, tc].set(vars_)
    return means, L


if __name__ == "__main__":
    data_shape = (8, 8)   # (H, W): 3 conv stages -> 8 channels, features_in = 8*8 = 64
    key = jax.random.PRNGKey(0)
    pkey, xkey = jax.random.split(key)
    params = init_params(pkey, data_shape)
    packed = pack_params(params, data_shape)          # one-time weight folding + slab packing
    x = jax.random.normal(xkey, (2, 1, *data_shape), jnp.float32)

    fwd = jax.jit(partial(time_frequency_cnn_forward, packed))
    means, scale_tril = fwd(x)
    jax.block_until_ready((means, scale_tril))

    # correctness: fused bf16-weight Pallas kernel vs unfused f32 conv reference
    # (tolerance loosened vs the pure-f32 version to absorb bf16 weight/activation rounding)
    means_ref, tril_ref = reference_forward(params, x)
    np.testing.assert_allclose(np.asarray(means), np.asarray(means_ref), rtol=1e-2, atol=1e-2)
    np.testing.assert_allclose(np.asarray(scale_tril), np.asarray(tril_ref), rtol=1e-2, atol=1e-2)

    assert means.shape == (2, NUM_PARAMS)
    assert scale_tril.shape == (2, NUM_PARAMS, NUM_PARAMS)
    assert bool(jnp.all(jnp.isfinite(means))) and bool(jnp.all(jnp.isfinite(scale_tril)))
    print("KERNEL_OK")
</pallas_src>

<mosaic_0001>
module attributes {stable_mosaic.version = 11 : i64} {
  func.func @_fused_forward_kernel(%arg0: i32, %arg1: memref<8x64xf32, #tpu.memory_space<vmem>>, %arg2: memref<400x512xbf16, #tpu.memory_space<vmem>>, %arg3: memref<8x128xf32, #tpu.memory_space<vmem>>) attributes {dimension_semantics = [#tpu.dimension_semantics<arbitrary>], iteration_bounds = array<i64: 1>, scalar_prefetch = 0 : i64, scratch_operands = 0 : i64, tpu.core_type = #tpu.core_type<tc>, window_params = [{pipeline_mode = #tpu.pipeline_mode<synchronous>, transform_indices = @transform_0, window_bounds = array<i64: 8, 64>}, {pipeline_mode = #tpu.pipeline_mode<synchronous>, transform_indices = @transform_1, window_bounds = array<i64: 400, 512>}, {pipeline_mode = #tpu.pipeline_mode<synchronous>, transform_indices = @transform_2, window_bounds = array<i64: 8, 128>}]} {
    %c384 = arith.constant 384 : index
    %c0 = arith.constant 0 : index
    %0 = vector.load %arg2[%c384, %c0] : memref<400x512xbf16, #tpu.memory_space<vmem>>, vector<16x512xbf16>
    %1 = arith.extf %0 : vector<16x512xbf16> to vector<16x512xf32>
    %c0_0 = arith.constant 0 : index
    %c0_1 = arith.constant 0 : index
    %2 = vector.load %arg1[%c0_0, %c0_1] : memref<8x64xf32, #tpu.memory_space<vmem>>, vector<8x64xf32>
    %cst = arith.constant dense<0.000000e+00> : vector<8xf32>
    %3 = vector.multi_reduction <add>, %2, %cst [1] : vector<8x64xf32> to vector<8xf32>
    %4 = vector.shape_cast %3 : vector<8xf32> to vector<8x1xf32>
    %cst_2 = arith.constant 1.562500e-02 : f32
    %5 = vector.broadcast %cst_2 : f32 to vector<8x1xf32>
    %6 = arith.mulf %4, %5 : vector<8x1xf32>
    %7 = vector.broadcast %6 : vector<8x1xf32> to vector<8x64xf32>
    %8 = arith.subf %2, %7 : vector<8x64xf32>
    %9 = arith.mulf %8, %8 : vector<8x64xf32>
    %cst_3 = arith.constant dense<0.000000e+00> : vector<8xf32>
    %10 = vector.multi_reduction <add>, %9, %cst_3 [1] : vector<8x64xf32> to vector<8xf32>
    %11 = vector.shape_cast %10 : vector<8xf32> to vector<8x1xf32>
    %cst_4 = arith.constant 0.0158730168 : f32
    %12 = vector.broadcast %cst_4 : f32 to vector<8x1xf32>
    %13 = arith.mulf %11, %12 : vector<8x1xf32>
    %cst_5 = arith.constant 9.99999996E-13 : f32
    %14 = vector.broadcast %cst_5 : f32 to vector<8x1xf32>
    %15 = arith.addf %13, %14 : vector<8x1xf32>
    %16 = math.rsqrt %15 : vector<8x1xf32>
    %17 = vector.broadcast %16 : vector<8x1xf32> to vector<8x64xf32>
    %18 = arith.mulf %8, %17 : vector<8x64xf32>
    %cst_6 = arith.constant -5.000000e+00 : f32
    %cst_7 = arith.constant 5.000000e+00 : f32
    %19 = vector.broadcast %cst_6 : f32 to vector<8x64xf32>
    %20 = arith.maximumf %19, %18 : vector<8x64xf32>
    %21 = vector.broadcast %cst_7 : f32 to vector<8x64xf32>
    %22 = arith.minimumf %21, %20 : vector<8x64xf32>
    %c0_8 = arith.constant 0 : index
    %c0_9 = arith.constant 0 : index
    %23 = vector.load %arg2[%c0_8, %c0_9] : memref<400x512xbf16, #tpu.memory_space<vmem>>, vector<64x128xbf16>
    %24 = arith.truncf %22 : vector<8x64xf32> to vector<8x64xbf16>
    %cst_10 = arith.constant dense<0.000000e+00> : vector<8x128xf32>
    %25 = tpu.matmul %24, %23, %cst_10 {dimension_numbers = #tpu.dot_dimension_numbers<[1], [0], [0], [1], [0, 0, 1, 1], [], []>} : vector<8x64xbf16>, vector<64x128xbf16>, vector<8x128xf32> -> vector<8x128xf32>
    %26 = vector.extract_strided_slice %1 {offsets = [0, 0], sizes = [1, 128], strides = [1, 1]} : vector<16x512xf32> to vector<1x128xf32>
    %27 = vector.broadcast %26 : vector<1x128xf32> to vector<8x128xf32>
    %28 = arith.addf %25, %27 : vector<8x128xf32>
    %cst_11 = arith.constant 0.00999999977 : f32
    %29 = vector.broadcast %cst_11 : f32 to vector<8x128xf32>
    %30 = arith.mulf %29, %28 : vector<8x128xf32>
    %31 = arith.maximumf %28, %30 : vector<8x128xf32>
    %c0_12 = arith.constant 0 : index
    %c128 = arith.constant 128 : index
    %32 = vector.load %arg2[%c0_12, %c128] : memref<400x512xbf16, #tpu.memory_space<vmem>>, vector<128x128xbf16>
    %33 = arith.truncf %31 : vector<8x128xf32> to vector<8x128xbf16>
    %cst_13 = arith.constant dense<0.000000e+00> : vector<8x128xf32>
    %34 = tpu.matmul %33, %32, %cst_13 {dimension_numbers = #tpu.dot_dimension_numbers<[1], [0], [0], [1], [0, 0, 1, 1], [], []>} : vector<8x128xbf16>, vector<128x128xbf16>, vector<8x128xf32> -> vector<8x128xf32>
    %35 = vector.extract_strided_slice %1 {offsets = [1, 0], sizes = [1, 128], strides = [1, 1]} : vector<16x512xf32> to vector<1x128xf32>
    %36 = vector.broadcast %35 : vector<1x128xf32> to vector<8x128xf32>
    %37 = arith.addf %34, %36 : vector<8x128xf32>
    %cst_14 = arith.constant 0.00999999977 : f32
    %38 = vector.broadcast %cst_14 : f32 to vector<8x128xf32>
    %39 = arith.mulf %38, %37 : vector<8x128xf32>
    %40 = arith.maximumf %37, %39 : vector<8x128xf32>
    %c0_15 = arith.constant 0 : index
    %c256 = arith.constant 256 : index
    %41 = vector.load %arg2[%c0_15, %c256] : memref<400x512xbf16, #tpu.memory_space<vmem>>, vector<128x128xbf16>
    %42 = arith.truncf %40 : vector<8x128xf32> to vector<8x128xbf16>
    %cst_16 = arith.constant dense<0.000000e+00> : vector<8x128xf32>
    %43 = tpu.matmul %42, %41, %cst_16 {dimension_numbers = #tpu.dot_dimension_numbers<[1], [0], [0], [1], [0, 0, 1, 1], [], []>} : vector<8x128xbf16>, vector<128x128xbf16>, vector<8x128xf32> -> vector<8x128xf32>
    %44 = vector.extract_strided_slice %1 {offsets = [2, 0], sizes = [1, 128], strides = [1, 1]} : vector<16x512xf32> to vector<1x128xf32>
    %45 = vector.broadcast %44 : vector<1x128xf32> to vector<8x128xf32>
    %46 = arith.addf %43, %45 : vector<8x128xf32>
    %cst_17 = arith.constant 0.00999999977 : f32
    %47 = vector.broadcast %cst_17 : f32 to vector<8x128xf32>
    %48 = arith.mulf %47, %46 : vector<8x128xf32>
    %49 = arith.maximumf %46, %48 : vector<8x128xf32>
    %c128_18 = arith.constant 128 : index
    %c0_19 = arith.constant 0 : index
    %50 = vector.load %arg2[%c128_18, %c0_19] : memref<400x512xbf16, #tpu.memory_space<vmem>>, vector<128x512xbf16>
    %51 = arith.truncf %49 : vector<8x128xf32> to vector<8x128xbf16>
    %cst_20 = arith.constant dense<0.000000e+00> : vector<8x512xf32>
    %52 = tpu.matmul %51, %50, %cst_20 {dimension_numbers = #tpu.dot_dimension_numbers<[1], [0], [0], [1], [0, 0, 1, 1], [], []>} : vector<8x128xbf16>, vector<128x512xbf16>, vector<8x512xf32> -> vector<8x512xf32>
    %53 = vector.extract_strided_slice %1 {offsets = [3, 0], sizes = [1, 512], strides = [1, 1]} : vector<16x512xf32> to vector<1x512xf32>
    %54 = vector.broadcast %53 : vector<1x512xf32> to vector<8x512xf32>
    %55 = arith.addf %52, %54 : vector<8x512xf32>
    %cst_21 = arith.constant 0.00999999977 : f32
    %56 = vector.broadcast %cst_21 : f32 to vector<8x512xf32>
    %57 = arith.mulf %56, %55 : vector<8x512xf32>
    %58 = arith.maximumf %55, %57 : vector<8x512xf32>
    %59 = arith.truncf %58 : vector<8x512xf32> to vector<8x512xbf16>
    %60 = vector.extract_strided_slice %1 {offsets = [4, 0], sizes = [1, 128], strides = [1, 1]} : vector<16x512xf32> to vector<1x128xf32>
    %61 = vector.shape_cast %60 : vector<1x128xf32> to vector<1x128xf32>
    %62 = vector.broadcast %61 : vector<1x128xf32> to vector<8x128xf32>
    %63 = vector.extract_strided_slice %59 {offsets = [0, 0], sizes = [8, 128], strides = [1, 1]} : vector<8x512xbf16> to vector<8x128xbf16>
    %c256_22 = arith.constant 256 : index
    %c0_23 = arith.constant 0 : index
    %64 = vector.load %arg2[%c256_22, %c0_23] : memref<400x512xbf16, #tpu.memory_space<vmem>>, vector<128x128xbf16>
    %cst_24 = arith.constant dense<0.000000e+00> : vector<8x128xf32>
    %65 = tpu.matmul %63, %64, %cst_24 {dimension_numbers = #tpu.dot_dimension_numbers<[1], [0], [0], [1], [0, 0, 1, 1], [], []>} : vector<8x128xbf16>, vector<128x128xbf16>, vector<8x128xf32> -> vector<8x128xf32>
    %66 = arith.addf %62, %65 : vector<8x128xf32>
    %67 = vector.extract_strided_slice %59 {offsets = [0, 128], sizes = [8, 128], strides = [1, 1]} : vector<8x512xbf16> to vector<8x128xbf16>
    %c256_25 = arith.constant 256 : index
    %c128_26 = arith.constant 128 : index
    %68 = vector.load %arg2[%c256_25, %c128_26] : memref<400x512xbf16, #tpu.memory_space<vmem>>, vector<128x128xbf16>
    %cst_27 = arith.constant dense<0.000000e+00> : vector<8x128xf32>
    %69 = tpu.matmul %67, %68, %cst_27 {dimension_numbers = #tpu.dot_dimension_numbers<[1], [0], [0], [1], [0, 0, 1, 1], [], []>} : vector<8x128xbf16>, vector<128x128xbf16>, vector<8x128xf32> -> vector<8x128xf32>
    %70 = arith.addf %66, %69 : vector<8x128xf32>
    %71 = vector.extract_strided_slice %59 {offsets = [0, 256], sizes = [8, 128], strides = [1, 1]} : vector<8x512xbf16> to vector<8x128xbf16>
    %c256_28 = arith.constant 256 : index
    %c256_29 = arith.constant 256 : index
    %72 = vector.load %arg2[%c256_28, %c256_29] : memref<400x512xbf16, #tpu.memory_space<vmem>>, vector<128x128xbf16>
    %cst_30 = arith.constant dense<0.000000e+00> : vector<8x128xf32>
    %73 = tpu.matmul %71, %72, %cst_30 {dimension_numbers = #tpu.dot_dimension_numbers<[1], [0], [0], [1], [0, 0, 1, 1], [], []>} : vector<8x128xbf16>, vector<128x128xbf16>, vector<8x128xf32> -> vector<8x128xf32>
    %74 = arith.addf %70, %73 : vector<8x128xf32>
    %75 = vector.extract_strided_slice %59 {offsets = [0, 384], sizes = [8, 128], strides = [1, 1]} : vector<8x512xbf16> to vector<8x128xbf16>
    %c256_31 = arith.constant 256 : index
    %c384_32 = arith.constant 384 : index
    %76 = vector.load %arg2[%c256_31, %c384_32] : memref<400x512xbf16, #tpu.memory_space<vmem>>, vector<128x128xbf16>
    %cst_33 = arith.constant dense<0.000000e+00> : vector<8x128xf32>
    %77 = tpu.matmul %75, %76, %cst_33 {dimension_numbers = #tpu.dot_dimension_numbers<[1], [0], [0], [1], [0, 0, 1, 1], [], []>} : vector<8x128xbf16>, vector<128x128xbf16>, vector<8x128xf32> -> vector<8x128xf32>
    %78 = arith.addf %74, %77 : vector<8x128xf32>
    %79 = vector.extract_strided_slice %1 {offsets = [5, 0], sizes = [1, 128], strides = [1, 1]} : vector<16x512xf32> to vector<1x128xf32>
    %80 = vector.shape_cast %79 : vector<1x128xf32> to vector<1x128xf32>
    %81 = vector.broadcast %80 : vector<1x128xf32> to vector<8x128xf32>
    %cst_34 = arith.constant 5.000000e-01 : f32
    %82 = vector.broadcast %cst_34 : f32 to vector<8x128xf32>
    %83 = arith.cmpf ogt, %81, %82 : vector<8x128xf32>
    %cst_35 = arith.constant 2.71828175 : f32
    %84 = vector.broadcast %cst_35 : f32 to vector<8x128xf32>
    %85 = arith.addf %78, %84 : vector<8x128xf32>
    %86 = math.exp %85 : vector<8x128xf32>
    %87 = arith.select %83, %86, %78 : vector<8x128xi1>, vector<8x128xf32>
    %c0_36 = arith.constant 0 : index
    %c0_37 = arith.constant 0 : index
    %88 = vector.load %arg3[%c0_36, %c0_37] : memref<8x128xf32, #tpu.memory_space<vmem>>, vector<8x128xf32>
    tpu.vector_store %arg3[%c0_36, %c0_37], %87 {strides = array<i32>} : memref<8x128xf32, #tpu.memory_space<vmem>>, vector<8x128xf32>,
    return
  }
  func.func @transform_0(%arg0: i32) -> (i32, i32) {
    %c0_i32 = arith.constant 0 : i32
    %c0_i32_0 = arith.constant 0 : i32
    %c0_i32_1 = arith.constant 0 : i32
    return %c0_i32, %c0_i32_0 : i32, i32
  }
  func.func @transform_1(%arg0: i32) -> (i32, i32) {
    %c0_i32 = arith.constant 0 : i32
    %c0_i32_0 = arith.constant 0 : i32
    %c0_i32_1 = arith.constant 0 : i32
    return %c0_i32, %c0_i32_0 : i32, i32
  }
  func.func @transform_2(%arg0: i32) -> (i32, i32) {
    %c0_i32 = arith.constant 0 : i32
    %c0_i32_0 = arith.constant 0 : i32
    %c0_i32_1 = arith.constant 0 : i32
    return %c0_i32, %c0_i32_0 : i32, i32
  }
}

</mosaic_0001>

<llo_original>
// kernel: time_frequency_cnn_forward.1
$region0: #{time_frequency_cnn_forward.1}
  #allocation0 [shape = 'u32[]', space=smem, size = 0x4, offset = 0x4, fixed_abs, tag = 'smem constant byte address 0x4 - core index']
  #allocation1 [shape = 'u32[144,128]{1,0:T(1,128)}', space=vmem, size = 0x12000, scoped, tag = 'internal scratch']
  %s0 = inlined_call_operand.vmem [shape: f32[8,64], index: 0, kind: input, shape index: {}]
  %s1 = inlined_call_operand.vmem [shape: bf16[400,512], index: 1, kind: input, shape index: {}]
  %s2 = inlined_call_operand.vmem [shape: f32[8,128], index: 2, kind: output, shape index: {}]
  %s3 = sld [smem:[#allocation0]]
  $region18: #{time_frequency_cnn_forward.1} parent=0
    _
  %s5 = ssub.s32 1, %s3
  %s6 = scalar_select 0, %s5, %s3
  // Predicated region
  $region2: #{time_frequency_cnn_forward.1} parent=0 // pred_check
    _
  $region3: #{time_frequency_cnn_forward.1} parent=0 // pred_check_branch
    %8 = sbr.rel (0) target = $region5
  $region4: #{time_frequency_cnn_forward.1} parent=0 // pred_region
    _
  $region5: #{time_frequency_cnn_forward.1} parent=0 // pred_fallthru
    _
  // Predicated region
  $region6: #{time_frequency_cnn_forward.1} parent=0 // pred_check
    _
  $region7: #{time_frequency_cnn_forward.1} parent=0 // pred_check_branch
    %10 = sbr.rel (0) target = $region9
  $region8: #{time_frequency_cnn_forward.1} parent=0 // pred_region
    _
  $region9: #{time_frequency_cnn_forward.1} parent=0 // pred_fallthru
    _
  %v12 = vld [vmem:[%s1 + $0x300] sm:$0xff]
  %v13 = vld [vmem:[%s1 + $0x308] sm:$0xff]
  %v14 = vunpack.c.l.bf16 %v12
  %v15 = vunpack.c.h.bf16 %v12
  %v16 = vunpack.c.l.bf16 %v13
  %v17 = vunpack.c.h.bf16 %v13
  %v18 = vld [vmem:[%s0] sm:$0xff]
  %vm19 = vcmask 523264
  %v20 = vsel %vm19, %v18, 0.0
  %21 = vadd.xlane.f32.xlu0 %v20
  %v22 = vpop.xlane.xlu0 %21
  %v23 = vmul.f32 %v22, 0.015625
  %v24 = vsub.f32 %v18, %v23
  %v25 = vmul.f32 %v24, %v24
  %v26 = vsel %vm19, %v25, 0.0
  %27 = vadd.xlane.f32.xlu0 %v26
  %v28 = vpop.xlane.xlu0 %27
  %v29 = vmul.f32 %v28, 0.015873017
  %v30 = vadd.f32 %v29, 1e-12
  %v31 = vrsqrt.pop %v30
  %v32 = vmul.f32 %v24, %v31
  %v33 = vmax.f32 %v32, -5.0
  %v34 = vmin.f32 %v33, 5.0
  %v35 = vld [vmem:[%s1] sm:$0xf]
  %v36 = vld [vmem:[%s1 + $0x10] sm:$0xf]
  %v37 = vld [vmem:[%s1 + $0x20] sm:$0xf]
  %v38 = vld [vmem:[%s1 + $0x30] sm:$0xf]
  %v39 = vld [vmem:[%s1 + $0x40] sm:$0xf]
  %v40 = vld [vmem:[%s1 + $0x50] sm:$0xf]
  %v41 = vld [vmem:[%s1 + $0x60] sm:$0xf]
  %v42 = vld [vmem:[%s1 + $0x70] sm:$0xf]
  %v43 = vpack.c.bf16 %v34, %v34
  %v44 = vlaneseq
  %v45 = vshrl.u32 %v44, 7
  %v46 = vsub.s32 0, %v45
  %v47 = vrot.slane %v14, %v46
  %v56 = vunpack.c.l.b16 %v35
  %v57 = vunpack.c.l.b16 %v36
  %v58 = vunpack.c.l.b16 %v37
  %v59 = vunpack.c.l.b16 %v38
  %v60 = vunpack.c.l.b16 %v39
  %v61 = vunpack.c.l.b16 %v40
  %v62 = vunpack.c.l.b16 %v41
  %v63 = vunpack.c.l.b16 %v42
  %v64 = vpack.c.b16 %v57, %v56
  %v65 = vpack.c.b16 %v59, %v58
  %v66 = vpack.c.b16 %v61, %v60
  %v67 = vpack.c.b16 %v63, %v62
  %v73 = vsel %vm19, %v43, 0
  %75 = vmatprep.subr.bf16.mxu0 0
  %76 = vmatpush1.bf16.msra.mxu0 %v64
  %77 = vmatprep.subr.bf16.mxu0 0
  %78 = vmatpush1.bf16.msra.mxu0 %v65
  %79 = vmatprep.subr.bf16.mxu0 0
  %80 = vmatpush1.bf16.msra.mxu0 %v66
  %81 = vmatprep.subr.bf16.mxu0 0
  %82 = vmatpush1.bf16.msra.mxu0 %v67
  %83 = vmatprep.subr.bf16.mxu0 0
  %84 = vmatpush1.bf16.msra.mxu0 0
  %85 = vmatprep.subr.bf16.mxu0 0
  %86 = vmatpush1.bf16.msra.mxu0 0
  %87 = vmatprep.subr.bf16.mxu0 0
  %88 = vmatpush1.bf16.msra.mxu0 0
  %89 = vmatprep.subr.bf16.mxu0 0
  %90 = vmatpush1.bf16.msra.mxu0 0
  %91 = vmatprep.subr.bf16.mxu0 0
  %92 = vmatpush1.bf16.msra.mxu0 0
  %93 = vmatprep.subr.bf16.mxu0 0
  %94 = vmatpush1.bf16.msra.mxu0 0
  %95 = vmatprep.subr.bf16.mxu0 0
  %96 = vmatpush1.bf16.msra.mxu0 0
  %97 = vmatprep.subr.bf16.mxu0 0
  %98 = vmatpush1.bf16.msra.mxu0 0
  %99 = vmatprep.subr.bf16.mxu0 0
  %100 = vmatpush1.bf16.msra.mxu0 0
  %101 = vmatprep.subr.bf16.mxu0 0
  %102 = vmatpush1.bf16.msra.mxu0 0
  %103 = vmatprep.subr.bf16.mxu0 0
  %104 = vmatpush1.bf16.msra.mxu0 0
  %105 = vmatprep.subr.bf16.mxu0 0
  %106 = vmatpush1.bf16.msra.mxu0 0
  %107 = vmatprep.mubr.bf16.mxu0 0
  %108 = vmatmul.mubr.bf16.gmra.mrb[0].mxu0 %v73
  %v109 = vpop.f32.mrb[0].mxu0
  %v110 = vadd.f32 %v47, %v109
  %v111 = vpop.f32.mrb[0].mxu0
  %v112 = vpop.f32.mrb[0].mxu0
  %v113 = vpop.f32.mrb[0].mxu0
  %114 = vdwg.mxu0
  %v115 = vmul.f32 %v110, 0.01
  %v116 = vmax.f32 %v110, %v115
  %v117 = vld [vmem:[%s1 + $0x4] sm:$0xf]
  %v118 = vld [vmem:[%s1 + $0x14] sm:$0xf]
  %v119 = vld [vmem:[%s1 + $0x24] sm:$0xf]
  %v120 = vld [vmem:[%s1 + $0x34] sm:$0xf]
  %v121 = vld [vmem:[%s1 + $0x44] sm:$0xf]
  %v122 = vld [vmem:[%s1 + $0x54] sm:$0xf]
  %v123 = vld [vmem:[%s1 + $0x64] sm:$0xf]
  %v124 = vld [vmem:[%s1 + $0x74] sm:$0xf]
  %v125 = vld [vmem:[%s1 + $0x84] sm:$0xf]
  %v126 = vld [vmem:[%s1 + $0x94] sm:$0xf]
  %v127 = vld [vmem:[%s1 + $0xa4] sm:$0xf]
  %v128 = vld [vmem:[%s1 + $0xb4] sm:$0xf]
  %v129 = vld [vmem:[%s1 + $0xc4] sm:$0xf]
  %v130 = vld [vmem:[%s1 + $0xd4] sm:$0xf]
  %v131 = vld [vmem:[%s1 + $0xe4] sm:$0xf]
  %v132 = vld [vmem:[%s1 + $0xf4] sm:$0xf]
  %v133 = vpack.c.bf16 %v116, %v116
  %v134 = vlaneseq
  %v135 = vshrl.u32 %v134, 7
  %v136 = vsub.s32 1, %v135
  %v137 = vrot.slane %v14, %v136
  %v154 = vunpack.c.l.b16 %v117
  %v155 = vunpack.c.l.b16 %v118
  %v156 = vunpack.c.l.b16 %v119
  %v157 = vunpack.c.l.b16 %v120
  %v158 = vunpack.c.l.b16 %v121
  %v159 = vunpack.c.l.b16 %v122
  %v160 = vunpack.c.l.b16 %v123
  %v161 = vunpack.c.l.b16 %v124
  %v162 = vunpack.c.l.b16 %v125
  %v163 = vunpack.c.l.b16 %v126
  %v164 = vunpack.c.l.b16 %v127
  %v165 = vunpack.c.l.b16 %v128
  %v166 = vunpack.c.l.b16 %v129
  %v167 = vunpack.c.l.b16 %v130
  %v168 = vunpack.c.l.b16 %v131
  %v169 = vunpack.c.l.b16 %v132
  %v170 = vpack.c.b16 %v155, %v154
  %v171 = vpack.c.b16 %v157, %v156
  %v172 = vpack.c.b16 %v159, %v158
  %v173 = vpack.c.b16 %v161, %v160
  %v174 = vpack.c.b16 %v163, %v162
  %v175 = vpack.c.b16 %v165, %v164
  %v176 = vpack.c.b16 %v167, %v166
  %v177 = vpack.c.b16 %v169, %v168
  %186 = vmatprep.subr.bf16.mxu0 0
  %187 = vmatpush1.bf16.msra.mxu0 %v170
  %188 = vmatprep.subr.bf16.mxu0 0
  %189 = vmatpush1.bf16.msra.mxu0 %v171
  %190 = vmatprep.subr.bf16.mxu0 0
  %191 = vmatpush1.bf16.msra.mxu0 %v172
  %192 = vmatprep.subr.bf16.mxu0 0
  %193 = vmatpush1.bf16.msra.mxu0 %v173
  %194 = vmatprep.subr.bf16.mxu0 0
  %195 = vmatpush1.bf16.msra.mxu0 %v174
  %196 = vmatprep.subr.bf16.mxu0 0
  %197 = vmatpush1.bf16.msra.mxu0 %v175
  %198 = vmatprep.subr.bf16.mxu0 0
  %199 = vmatpush1.bf16.msra.mxu0 %v176
  %200 = vmatprep.subr.bf16.mxu0 0
  %201 = vmatpush1.bf16.msra.mxu0 %v177
  %202 = vmatprep.subr.bf16.mxu0 0
  %203 = vmatpush1.bf16.msra.mxu0 0
  %204 = vmatprep.subr.bf16.mxu0 0
  %205 = vmatpush1.bf16.msra.mxu0 0
  %206 = vmatprep.subr.bf16.mxu0 0
  %207 = vmatpush1.bf16.msra.mxu0 0
  %208 = vmatprep.subr.bf16.mxu0 0
  %209 = vmatpush1.bf16.msra.mxu0 0
  %210 = vmatprep.subr.bf16.mxu0 0
  %211 = vmatpush1.bf16.msra.mxu0 0
  %212 = vmatprep.subr.bf16.mxu0 0
  %213 = vmatpush1.bf16.msra.mxu0 0
  %214 = vmatprep.subr.bf16.mxu0 0
  %215 = vmatpush1.bf16.msra.mxu0 0
  %216 = vmatprep.subr.bf16.mxu0 0
  %217 = vmatpush1.bf16.msra.mxu0 0
  %218 = vmatprep.mubr.bf16.mxu0 0
  %219 = vmatmul.mubr.bf16.gmra.mrb[0].mxu0 %v133
  %v220 = vpop.f32.mrb[0].mxu0
  %v221 = vadd.f32 %v137, %v220
  %v222 = vpop.f32.mrb[0].mxu0
  %v223 = vpop.f32.mrb[0].mxu0
  %v224 = vpop.f32.mrb[0].mxu0
  %225 = vdwg.mxu0
  %v226 = vmul.f32 %v221, 0.01
  %v227 = vmax.f32 %v221, %v226
  %v228 = vld [vmem:[%s1 + $0x8] sm:$0xf]
  %v229 = vld [vmem:[%s1 + $0x18] sm:$0xf]
  %v230 = vld [vmem:[%s1 + $0x28] sm:$0xf]
  %v231 = vld [vmem:[%s1 + $0x38] sm:$0xf]
  %v232 = vld [vmem:[%s1 + $0x48] sm:$0xf]
  %v233 = vld [vmem:[%s1 + $0x58] sm:$0xf]
  %v234 = vld [vmem:[%s1 + $0x68] sm:$0xf]
  %v235 = vld [vmem:[%s1 + $0x78] sm:$0xf]
  %v236 = vld [vmem:[%s1 + $0x88] sm:$0xf]
  %v237 = vld [vmem:[%s1 + $0x98] sm:$0xf]
  %v238 = vld [vmem:[%s1 + $0xa8] sm:$0xf]
  %v239 = vld [vmem:[%s1 + $0xb8] sm:$0xf]
  %v240 = vld [vmem:[%s1 + $0xc8] sm:$0xf]
  %v241 = vld [vmem:[%s1 + $0xd8] sm:$0xf]
  %v242 = vld [vmem:[%s1 + $0xe8] sm:$0xf]
  %v243 = vld [vmem:[%s1 + $0xf8] sm:$0xf]
  %v244 = vpack.c.bf16 %v227, %v227
  %v245 = vlaneseq
  %v246 = vshrl.u32 %v245, 7
  %v247 = vsub.s32 2, %v246
  %v248 = vrot.slane %v14, %v247
  %v265 = vunpack.c.l.b16 %v228
  %v266 = vunpack.c.l.b16 %v229
  %v267 = vunpack.c.l.b16 %v230
  %v268 = vunpack.c.l.b16 %v231
  %v269 = vunpack.c.l.b16 %v232
  %v270 = vunpack.c.l.b16 %v233
  %v271 = vunpack.c.l.b16 %v234
  %v272 = vunpack.c.l.b16 %v235
  %v273 = vunpack.c.l.b16 %v236
  %v274 = vunpack.c.l.b16 %v237
  %v275 = vunpack.c.l.b16 %v238
  %v276 = vunpack.c.l.b16 %v239
  %v277 = vunpack.c.l.b16 %v240
  %v278 = vunpack.c.l.b16 %v241
  %v279 = vunpack.c.l.b16 %v242
  %v280 = vunpack.c.l.b16 %v243
  %v281 = vpack.c.b16 %v266, %v265
  %v282 = vpack.c.b16 %v268, %v267
  %v283 = vpack.c.b16 %v270, %v269
  %v284 = vpack.c.b16 %v272, %v271
  %v285 = vpack.c.b16 %v274, %v273
  %v286 = vpack.c.b16 %v276, %v275
  %v287 = vpack.c.b16 %v278, %v277
  %v288 = vpack.c.b16 %v280, %v279
  %297 = vmatprep.subr.bf16.mxu0 0
  %298 = vmatpush1.bf16.msra.mxu0 %v281
  %299 = vmatprep.subr.bf16.mxu0 0
  %300 = vmatpush1.bf16.msra.mxu0 %v282
  %301 = vmatprep.subr.bf16.mxu0 0
  %302 = vmatpush1.bf16.msra.mxu0 %v283
  %303 = vmatprep.subr.bf16.mxu0 0
  %304 = vmatpush1.bf16.msra.mxu0 %v284
  %305 = vmatprep.subr.bf16.mxu0 0
  %306 = vmatpush1.bf16.msra.mxu0 %v285
  %307 = vmatprep.subr.bf16.mxu0 0
  %308 = vmatpush1.bf16.msra.mxu0 %v286
  %309 = vmatprep.subr.bf16.mxu0 0
  %310 = vmatpush1.bf16.msra.mxu0 %v287
  %311 = vmatprep.subr.bf16.mxu0 0
  %312 = vmatpush1.bf16.msra.mxu0 %v288
  %313 = vmatprep.subr.bf16.mxu0 0
  %314 = vmatpush1.bf16.msra.mxu0 0
  %315 = vmatprep.subr.bf16.mxu0 0
  %316 = vmatpush1.bf16.msra.mxu0 0
  %317 = vmatprep.subr.bf16.mxu0 0
  %318 = vmatpush1.bf16.msra.mxu0 0
  %319 = vmatprep.subr.bf16.mxu0 0
  %320 = vmatpush1.bf16.msra.mxu0 0
  %321 = vmatprep.subr.bf16.mxu0 0
  %322 = vmatpush1.bf16.msra.mxu0 0
  %323 = vmatprep.subr.bf16.mxu0 0
  %324 = vmatpush1.bf16.msra.mxu0 0
  %325 = vmatprep.subr.bf16.mxu0 0
  %326 = vmatpush1.bf16.msra.mxu0 0
  %327 = vmatprep.subr.bf16.mxu0 0
  %328 = vmatpush1.bf16.msra.mxu0 0
  %329 = vmatprep.mubr.bf16.mxu0 0
  %330 = vmatmul.mubr.bf16.gmra.mrb[0].mxu0 %v244
  %v331 = vpop.f32.mrb[0].mxu0
  %v332 = vadd.f32 %v248, %v331
  %v333 = vpop.f32.mrb[0].mxu0
  %v334 = vpop.f32.mrb[0].mxu0
  %v335 = vpop.f32.mrb[0].mxu0
  %336 = vdwg.mxu0
  %v337 = vmul.f32 %v332, 0.01
  %v338 = vmax.f32 %v332, %v337
  %v339 = vld [vmem:[%s1 + $0x100] sm:$0xff]
  %v340 = vld [vmem:[%s1 + $0x108] sm:$0xff]
  %v341 = vld [vmem:[%s1 + $0x110] sm:$0xff]
  %v342 = vld [vmem:[%s1 + $0x118] sm:$0xff]
  %v343 = vld [vmem:[%s1 + $0x120] sm:$0xff]
  %v344 = vld [vmem:[%s1 + $0x128] sm:$0xff]
  %v345 = vld [vmem:[%s1 + $0x130] sm:$0xff]
  %v346 = vld [vmem:[%s1 + $0x138] sm:$0xff]
  %v347 = vld [vmem:[%s1 + $0x140] sm:$0xff]
  %v348 = vld [vmem:[%s1 + $0x148] sm:$0xff]
  %v349 = vld [vmem:[%s1 + $0x150] sm:$0xff]
  %v350 = vld [vmem:[%s1 + $0x158] sm:$0xff]
  %v351 = vld [vmem:[%s1 + $0x160] sm:$0xff]
  %v352 = vld [vmem:[%s1 + $0x168] sm:$0xff]
  %v353 = vld [vmem:[%s1 + $0x170] sm:$0xff]
  %v354 = vld [vmem:[%s1 + $0x178] sm:$0xff]
  %v355 = vld [vmem:[%s1 + $0x180] sm:$0xff]
  %v356 = vld [vmem:[%s1 + $0x188] sm:$0xff]
  %v357 = vld [vmem:[%s1 + $0x190] sm:$0xff]
  %v358 = vld [vmem:[%s1 + $0x198] sm:$0xff]
  %v359 = vld [vmem:[%s1 + $0x1a0] sm:$0xff]
  %v360 = vld [vmem:[%s1 + $0x1a8] sm:$0xff]
  %v361 = vld [vmem:[%s1 + $0x1b0] sm:$0xff]
  %v362 = vld [vmem:[%s1 + $0x1b8] sm:$0xff]
  %v363 = vld [vmem:[%s1 + $0x1c0] sm:$0xff]
  %v364 = vld [vmem:[%s1 + $0x1c8] sm:$0xff]
  %v365 = vld [vmem:[%s1 + $0x1d0] sm:$0xff]
  %v366 = vld [vmem:[%s1 + $0x1d8] sm:$0xff]
  %v367 = vld [vmem:[%s1 + $0x1e0] sm:$0xff]
  %v368 = vld [vmem:[%s1 + $0x1e8] sm:$0xff]
  %v369 = vld [vmem:[%s1 + $0x1f0] sm:$0xff]
  %v370 = vld [vmem:[%s1 + $0x1f8] sm:$0xff]
  %v371 = vpack.c.bf16 %v338, %v338
  %v372 = vlaneseq
  %v373 = vshrl.u32 %v372, 7
  %v374 = vsub.s32 3, %v373
  %v375 = vrot.slane %v14, %v374
  %v376 = vlaneseq
  %v377 = vshrl.u32 %v376, 7
  %v378 = vsub.s32 3, %v377
  %v379 = vrot.slane %v15, %v378
  %v380 = vlaneseq
  %v381 = vshrl.u32 %v380, 7
  %v382 = vsub.s32 3, %v381
  %v383 = vrot.slane %v16, %v382
  %v384 = vlaneseq
  %v385 = vshrl.u32 %v384, 7
  %v386 = vsub.s32 3, %v385
  %v387 = vrot.slane %v17, %v386
  %v420 = vunpack.c.l.b16 %v339
  %v421 = vunpack.c.h.b16 %v339
  %v422 = vunpack.c.l.b16 %v340
  %v423 = vunpack.c.h.b16 %v340
  %v424 = vunpack.c.l.b16 %v341
  %v425 = vunpack.c.h.b16 %v341
  %v426 = vunpack.c.l.b16 %v342
  %v427 = vunpack.c.h.b16 %v342
  %v428 = vunpack.c.l.b16 %v343
  %v429 = vunpack.c.h.b16 %v343
  %v430 = vunpack.c.l.b16 %v344
  %v431 = vunpack.c.h.b16 %v344
  %v432 = vunpack.c.l.b16 %v345
  %v433 = vunpack.c.h.b16 %v345
  %v434 = vunpack.c.l.b16 %v346
  %v435 = vunpack.c.h.b16 %v346
  %v436 = vunpack.c.l.b16 %v347
  %v437 = vunpack.c.h.b16 %v347
  %v438 = vunpack.c.l.b16 %v348
  %v439 = vunpack.c.h.b16 %v348
  %v440 = vunpack.c.l.b16 %v349
  %v441 = vunpack.c.h.b16 %v349
  %v442 = vunpack.c.l.b16 %v350
  %v443 = vunpack.c.h.b16 %v350
  %v444 = vunpack.c.l.b16 %v351
  %v445 = vunpack.c.h.b16 %v351
  %v446 = vunpack.c.l.b16 %v352
  %v447 = vunpack.c.h.b16 %v352
  %v448 = vunpack.c.l.b16 %v353
  %v449 = vunpack.c.h.b16 %v353
  %v450 = vunpack.c.l.b16 %v354
  %v451 = vunpack.c.h.b16 %v354
  %v452 = vunpack.c.l.b16 %v355
  %v453 = vunpack.c.h.b16 %v355
  %v454 = vunpack.c.l.b16 %v356
  %v455 = vunpack.c.h.b16 %v356
  %v456 = vunpack.c.l.b16 %v357
  %v457 = vunpack.c.h.b16 %v357
  %v458 = vunpack.c.l.b16 %v358
  %v459 = vunpack.c.h.b16 %v358
  %v460 = vunpack.c.l.b16 %v359
  %v461 = vunpack.c.h.b16 %v359
  %v462 = vunpack.c.l.b16 %v360
  %v463 = vunpack.c.h.b16 %v360
  %v464 = vunpack.c.l.b16 %v361
  %v465 = vunpack.c.h.b16 %v361
  %v466 = vunpack.c.l.b16 %v362
  %v467 = vunpack.c.h.b16 %v362
  %v468 = vunpack.c.l.b16 %v363
  %v469 = vunpack.c.h.b16 %v363
  %v470 = vunpack.c.l.b16 %v364
  %v471 = vunpack.c.h.b16 %v364
  %v472 = vunpack.c.l.b16 %v365
  %v473 = vunpack.c.h.b16 %v365
  %v474 = vunpack.c.l.b16 %v366
  %v475 = vunpack.c.h.b16 %v366
  %v476 = vunpack.c.l.b16 %v367
  %v477 = vunpack.c.h.b16 %v367
  %v478 = vunpack.c.l.b16 %v368
  %v479 = vunpack.c.h.b16 %v368
  %v480 = vunpack.c.l.b16 %v369
  %v481 = vunpack.c.h.b16 %v369
  %v482 = vunpack.c.l.b16 %v370
  %v483 = vunpack.c.h.b16 %v370
  %v484 = vpack.c.b16 %v424, %v420
  %v485 = vpack.c.b16 %v425, %v421
  %v486 = vpack.c.b16 %v426, %v422
  %v487 = vpack.c.b16 %v427, %v423
  %v488 = vpack.c.b16 %v432, %v428
  %v489 = vpack.c.b16 %v433, %v429
  %v490 = vpack.c.b16 %v434, %v430
  %v491 = vpack.c.b16 %v435, %v431
  %v492 = vpack.c.b16 %v440, %v436
  %v493 = vpack.c.b16 %v441, %v437
  %v494 = vpack.c.b16 %v442, %v438
  %v495 = vpack.c.b16 %v443, %v439
  %v496 = vpack.c.b16 %v448, %v444
  %v497 = vpack.c.b16 %v449, %v445
  %v498 = vpack.c.b16 %v450, %v446
  %v499 = vpack.c.b16 %v451, %v447
  %v500 = vpack.c.b16 %v456, %v452
  %v501 = vpack.c.b16 %v457, %v453
  %v502 = vpack.c.b16 %v458, %v454
  %v503 = vpack.c.b16 %v459, %v455
  %v504 = vpack.c.b16 %v464, %v460
  %v505 = vpack.c.b16 %v465, %v461
  %v506 = vpack.c.b16 %v466, %v462
  %v507 = vpack.c.b16 %v467, %v463
  %v508 = vpack.c.b16 %v472, %v468
  %v509 = vpack.c.b16 %v473, %v469
  %v510 = vpack.c.b16 %v474, %v470
  %v511 = vpack.c.b16 %v475, %v471
  %v512 = vpack.c.b16 %v480, %v476
  %v513 = vpack.c.b16 %v481, %v477
  %v514 = vpack.c.b16 %v482, %v478
  %v515 = vpack.c.b16 %v483, %v479
  %548 = vmatprep.subr.bf16.mxu0 %v485
  %549 = vmatpush1.bf16.msra.mxu0 %v484
  %550 = vmatprep.subr.bf16.mxu0 %v489
  %551 = vmatpush1.bf16.msra.mxu0 %v488
  %552 = vmatprep.subr.bf16.mxu0 %v493
  %553 = vmatpush1.bf16.msra.mxu0 %v492
  %554 = vmatprep.subr.bf16.mxu0 %v497
  %555 = vmatpush1.bf16.msra.mxu0 %v496
  %556 = vmatprep.subr.bf16.mxu0 %v501
  %557 = vmatpush1.bf16.msra.mxu0 %v500
  %558 = vmatprep.subr.bf16.mxu0 %v505
  %559 = vmatpush1.bf16.msra.mxu0 %v504
  %560 = vmatprep.subr.bf16.mxu0 %v509
  %561 = vmatpush1.bf16.msra.mxu0 %v508
  %562 = vmatprep.subr.bf16.mxu0 %v513
  %563 = vmatpush1.bf16.msra.mxu0 %v512
  %564 = vmatprep.subr.bf16.mxu0 0
  %565 = vmatpush1.bf16.msra.mxu0 0
  %566 = vmatprep.subr.bf16.mxu0 0
  %567 = vmatpush1.bf16.msra.mxu0 0
  %568 = vmatprep.subr.bf16.mxu0 0
  %569 = vmatpush1.bf16.msra.mxu0 0
  %570 = vmatprep.subr.bf16.mxu0 0
  %571 = vmatpush1.bf16.msra.mxu0 0
  %572 = vmatprep.subr.bf16.mxu0 0
  %573 = vmatpush1.bf16.msra.mxu0 0
  %574 = vmatprep.subr.bf16.mxu0 0
  %575 = vmatpush1.bf16.msra.mxu0 0
  %576 = vmatprep.subr.bf16.mxu0 0
  %577 = vmatpush1.bf16.msra.mxu0 0
  %578 = vmatprep.subr.bf16.mxu0 0
  %579 = vmatpush1.bf16.msra.mxu0 0
  %580 = vmatprep.mubr.bf16.mxu0 0
  %581 = vmatmul.mubr.bf16.gmra.mrb[0].mxu0 %v371
  %v582 = vpop.f32.mrb[0].mxu0
  %v583 = vadd.f32 %v375, %v582
  %v584 = vpop.f32.mrb[0].mxu0
  %v585 = vadd.f32 %v379, %v584
  %v586 = vpop.f32.mrb[0].mxu0
  %v587 = vpop.f32.mrb[0].mxu0
  %588 = vdwg.mxu0
  %589 = vmatprep.subr.bf16.mxu0 %v487
  %590 = vmatpush1.bf16.msra.mxu0 %v486
  %591 = vmatprep.subr.bf16.mxu0 %v491
  %592 = vmatpush1.bf16.msra.mxu0 %v490
  %593 = vmatprep.subr.bf16.mxu0 %v495
  %594 = vmatpush1.bf16.msra.mxu0 %v494
  %595 = vmatprep.subr.bf16.mxu0 %v499
  %596 = vmatpush1.bf16.msra.mxu0 %v498
  %597 = vmatprep.subr.bf16.mxu0 %v503
  %598 = vmatpush1.bf16.msra.mxu0 %v502
  %599 = vmatprep.subr.bf16.mxu0 %v507
  %600 = vmatpush1.bf16.msra.mxu0 %v506
  %601 = vmatprep.subr.bf16.mxu0 %v511
  %602 = vmatpush1.bf16.msra.mxu0 %v510
  %603 = vmatprep.subr.bf16.mxu0 %v515
  %604 = vmatpush1.bf16.msra.mxu0 %v514
  %605 = vmatprep.subr.bf16.mxu0 0
  %606 = vmatpush1.bf16.msra.mxu0 0
  %607 = vmatprep.subr.bf16.mxu0 0
  %608 = vmatpush1.bf16.msra.mxu0 0
  %609 = vmatprep.subr.bf16.mxu0 0
  %610 = vmatpush1.bf16.msra.mxu0 0
  %611 = vmatprep.subr.bf16.mxu0 0
  %612 = vmatpush1.bf16.msra.mxu0 0
  %613 = vmatprep.subr.bf16.mxu0 0
  %614 = vmatpush1.bf16.msra.mxu0 0
  %615 = vmatprep.subr.bf16.mxu0 0
  %616 = vmatpush1.bf16.msra.mxu0 0
  %617 = vmatprep.subr.bf16.mxu0 0
  %618 = vmatpush1.bf16.msra.mxu0 0
  %619 = vmatprep.subr.bf16.mxu0 0
  %620 = vmatpush1.bf16.msra.mxu0 0
  %621 = vmatprep.mubr.bf16.mxu0 0
  %622 = vmatmul.mubr.bf16.gmra.mrb[0].mxu0 %v371
  %v623 = vpop.f32.mrb[0].mxu0
  %v624 = vadd.f32 %v383, %v623
  %v625 = vpop.f32.mrb[0].mxu0
  %v626 = vadd.f32 %v387, %v625
  %v627 = vpop.f32.mrb[0].mxu0
  %v628 = vpop.f32.mrb[0].mxu0
  %629 = vdwg.mxu0
  %v630 = vmul.f32 %v583, 0.01
  %v631 = vmul.f32 %v585, 0.01
  %v632 = vmul.f32 %v624, 0.01
  %v633 = vmul.f32 %v626, 0.01
  %v634 = vmax.f32 %v583, %v630
  %v635 = vmax.f32 %v585, %v631
  %v636 = vmax.f32 %v624, %v632
  %v637 = vmax.f32 %v626, %v633
  %v638 = vpack.c.bf16 %v634, %v634
  %v639 = vpack.c.bf16 %v635, %v635
  %v640 = vpack.c.bf16 %v636, %v636
  %v641 = vpack.c.bf16 %v637, %v637
  %v642 = vlaneseq
  %v643 = vshrl.u32 %v642, 7
  %v644 = vsub.s32 4, %v643
  %v645 = vrot.slane %v14, %v644
  %v646 = vld [vmem:[%s1 + $0x200] sm:$0xf]
  %v647 = vld [vmem:[%s1 + $0x210] sm:$0xf]
  %v648 = vld [vmem:[%s1 + $0x220] sm:$0xf]
  %v649 = vld [vmem:[%s1 + $0x230] sm:$0xf]
  %v650 = vld [vmem:[%s1 + $0x240] sm:$0xf]
  %v651 = vld [vmem:[%s1 + $0x250] sm:$0xf]
  %v652 = vld [vmem:[%s1 + $0x260] sm:$0xf]
  %v653 = vld [vmem:[%s1 + $0x270] sm:$0xf]
  %v654 = vld [vmem:[%s1 + $0x280] sm:$0xf]
  %v655 = vld [vmem:[%s1 + $0x290] sm:$0xf]
  %v656 = vld [vmem:[%s1 + $0x2a0] sm:$0xf]
  %v657 = vld [vmem:[%s1 + $0x2b0] sm:$0xf]
  %v658 = vld [vmem:[%s1 + $0x2c0] sm:$0xf]
  %v659 = vld [vmem:[%s1 + $0x2d0] sm:$0xf]
  %v660 = vld [vmem:[%s1 + $0x2e0] sm:$0xf]
  %v661 = vld [vmem:[%s1 + $0x2f0] sm:$0xf]
  %v678 = vunpack.c.l.b16 %v646
  %v679 = vunpack.c.l.b16 %v647
  %v680 = vunpack.c.l.b16 %v648
  %v681 = vunpack.c.l.b16 %v649
  %v682 = vunpack.c.l.b16 %v650
  %v683 = vunpack.c.l.b16 %v651
  %v684 = vunpack.c.l.b16 %v652
  %v685 = vunpack.c.l.b16 %v653
  %v686 = vunpack.c.l.b16 %v654
  %v687 = vunpack.c.l.b16 %v655
  %v688 = vunpack.c.l.b16 %v656
  %v689 = vunpack.c.l.b16 %v657
  %v690 = vunpack.c.l.b16 %v658
  %v691 = vunpack.c.l.b16 %v659
  %v692 = vunpack.c.l.b16 %v660
  %v693 = vunpack.c.l.b16 %v661
  %v694 = vpack.c.b16 %v679, %v678
  %v695 = vpack.c.b16 %v681, %v680
  %v696 = vpack.c.b16 %v683, %v682
  %v697 = vpack.c.b16 %v685, %v684
  %v698 = vpack.c.b16 %v687, %v686
  %v699 = vpack.c.b16 %v689, %v688
  %v700 = vpack.c.b16 %v691, %v690
  %v701 = vpack.c.b16 %v693, %v692
  %710 = vmatprep.subr.bf16.mxu0 0
  %711 = vmatpush1.bf16.msra.mxu0 %v694
  %712 = vmatprep.subr.bf16.mxu0 0
  %713 = vmatpush1.bf16.msra.mxu0 %v695
  %714 = vmatprep.subr.bf16.mxu0 0
  %715 = vmatpush1.bf16.msra.mxu0 %v696
  %716 = vmatprep.subr.bf16.mxu0 0
  %717 = vmatpush1.bf16.msra.mxu0 %v697
  %718 = vmatprep.subr.bf16.mxu0 0
  %719 = vmatpush1.bf16.msra.mxu0 %v698
  %720 = vmatprep.subr.bf16.mxu0 0
  %721 = vmatpush1.bf16.msra.mxu0 %v699
  %722 = vmatprep.subr.bf16.mxu0 0
  %723 = vmatpush1.bf16.msra.mxu0 %v700
  %724 = vmatprep.subr.bf16.mxu0 0
  %725 = vmatpush1.bf16.msra.mxu0 %v701
  %726 = vmatprep.subr.bf16.mxu0 0
  %727 = vmatpush1.bf16.msra.mxu0 0
  %728 = vmatprep.subr.bf16.mxu0 0
  %729 = vmatpush1.bf16.msra.mxu0 0
  %730 = vmatprep.subr.bf16.mxu0 0
  %731 = vmatpush1.bf16.msra.mxu0 0
  %732 = vmatprep.subr.bf16.mxu0 0
  %733 = vmatpush1.bf16.msra.mxu0 0
  %734 = vmatprep.subr.bf16.mxu0 0
  %735 = vmatpush1.bf16.msra.mxu0 0
  %736 = vmatprep.subr.bf16.mxu0 0
  %737 = vmatpush1.bf16.msra.mxu0 0
  %738 = vmatprep.subr.bf16.mxu0 0
  %739 = vmatpush1.bf16.msra.mxu0 0
  %740 = vmatprep.subr.bf16.mxu0 0
  %741 = vmatpush1.bf16.msra.mxu0 0
  %742 = vmatprep.mubr.bf16.mxu0 0
  %743 = vmatmul.mubr.bf16.gmra.mrb[0].mxu0 %v638
  %v744 = vpop.f32.mrb[0].mxu0
  %v745 = vadd.f32 0.0, %v744
  %v746 = vpop.f32.mrb[0].mxu0
  %v747 = vpop.f32.mrb[0].mxu0
  %v748 = vpop.f32.mrb[0].mxu0
  %749 = vdwg.mxu0
  %v750 = vadd.f32 %v645, %v745
  %v751 = vld [vmem:[%s1 + $0x204] sm:$0xf]
  %v752 = vld [vmem:[%s1 + $0x214] sm:$0xf]
  %v753 = vld [vmem:[%s1 + $0x224] sm:$0xf]
  %v754 = vld [vmem:[%s1 + $0x234] sm:$0xf]
  %v755 = vld [vmem:[%s1 + $0x244] sm:$0xf]
  %v756 = vld [vmem:[%s1 + $0x254] sm:$0xf]
  %v757 = vld [vmem:[%s1 + $0x264] sm:$0xf]
  %v758 = vld [vmem:[%s1 + $0x274] sm:$0xf]
  %v759 = vld [vmem:[%s1 + $0x284] sm:$0xf]
  %v760 = vld [vmem:[%s1 + $0x294] sm:$0xf]
  %v761 = vld [vmem:[%s1 + $0x2a4] sm:$0xf]
  %v762 = vld [vmem:[%s1 + $0x2b4] sm:$0xf]
  %v763 = vld [vmem:[%s1 + $0x2c4] sm:$0xf]
  %v764 = vld [vmem:[%s1 + $0x2d4] sm:$0xf]
  %v765 = vld [vmem:[%s1 + $0x2e4] sm:$0xf]
  %v766 = vld [vmem:[%s1 + $0x2f4] sm:$0xf]
  %v783 = vunpack.c.l.b16 %v751
  %v784 = vunpack.c.l.b16 %v752
  %v785 = vunpack.c.l.b16 %v753
  %v786 = vunpack.c.l.b16 %v754
  %v787 = vunpack.c.l.b16 %v755
  %v788 = vunpack.c.l.b16 %v756
  %v789 = vunpack.c.l.b16 %v757
  %v790 = vunpack.c.l.b16 %v758
  %v791 = vunpack.c.l.b16 %v759
  %v792 = vunpack.c.l.b16 %v760
  %v793 = vunpack.c.l.b16 %v761
  %v794 = vunpack.c.l.b16 %v762
  %v795 = vunpack.c.l.b16 %v763
  %v796 = vunpack.c.l.b16 %v764
  %v797 = vunpack.c.l.b16 %v765
  %v798 = vunpack.c.l.b16 %v766
  %v799 = vpack.c.b16 %v784, %v783
  %v800 = vpack.c.b16 %v786, %v785
  %v801 = vpack.c.b16 %v788, %v787
  %v802 = vpack.c.b16 %v790, %v789
  %v803 = vpack.c.b16 %v792, %v791
  %v804 = vpack.c.b16 %v794, %v793
  %v805 = vpack.c.b16 %v796, %v795
  %v806 = vpack.c.b16 %v798, %v797
  %815 = vmatprep.subr.bf16.mxu0 0
  %816 = vmatpush1.bf16.msra.mxu0 %v799
  %817 = vmatprep.subr.bf16.mxu0 0
  %818 = vmatpush1.bf16.msra.mxu0 %v800
  %819 = vmatprep.subr.bf16.mxu0 0
  %820 = vmatpush1.bf16.msra.mxu0 %v801
  %821 = vmatprep.subr.bf16.mxu0 0
  %822 = vmatpush1.bf16.msra.mxu0 %v802
  %823 = vmatprep.subr.bf16.mxu0 0
  %824 = vmatpush1.bf16.msra.mxu0 %v803
  %825 = vmatprep.subr.bf16.mxu0 0
  %826 = vmatpush1.bf16.msra.mxu0 %v804
  %827 = vmatprep.subr.bf16.mxu0 0
  %828 = vmatpush1.bf16.msra.mxu0 %v805
  %829 = vmatprep.subr.bf16.mxu0 0
  %830 = vmatpush1.bf16.msra.mxu0 %v806
  %831 = vmatprep.subr.bf16.mxu0 0
  %832 = vmatpush1.bf16.msra.mxu0 0
  %833 = vmatprep.subr.bf16.mxu0 0
  %834 = vmatpush1.bf16.msra.mxu0 0
  %835 = vmatprep.subr.bf16.mxu0 0
  %836 = vmatpush1.bf16.msra.mxu0 0
  %837 = vmatprep.subr.bf16.mxu0 0
  %838 = vmatpush1.bf16.msra.mxu0 0
  %839 = vmatprep.subr.bf16.mxu0 0
  %840 = vmatpush1.bf16.msra.mxu0 0
  %841 = vmatprep.subr.bf16.mxu0 0
  %842 = vmatpush1.bf16.msra.mxu0 0
  %843 = vmatprep.subr.bf16.mxu0 0
  %844 = vmatpush1.bf16.msra.mxu0 0
  %845 = vmatprep.subr.bf16.mxu0 0
  %846 = vmatpush1.bf16.msra.mxu0 0
  %847 = vmatprep.mubr.bf16.mxu0 0
  %848 = vmatmul.mubr.bf16.gmra.mrb[0].mxu0 %v639
  %v849 = vpop.f32.mrb[0].mxu0
  %v850 = vadd.f32 0.0, %v849
  %v851 = vpop.f32.mrb[0].mxu0
  %v852 = vpop.f32.mrb[0].mxu0
  %v853 = vpop.f32.mrb[0].mxu0
  %854 = vdwg.mxu0
  %v855 = vadd.f32 %v750, %v850
  %v856 = vld [vmem:[%s1 + $0x208] sm:$0xf]
  %v857 = vld [vmem:[%s1 + $0x218] sm:$0xf]
  %v858 = vld [vmem:[%s1 + $0x228] sm:$0xf]
  %v859 = vld [vmem:[%s1 + $0x238] sm:$0xf]
  %v860 = vld [vmem:[%s1 + $0x248] sm:$0xf]
  %v861 = vld [vmem:[%s1 + $0x258] sm:$0xf]
  %v862 = vld [vmem:[%s1 + $0x268] sm:$0xf]
  %v863 = vld [vmem:[%s1 + $0x278] sm:$0xf]
  %v864 = vld [vmem:[%s1 + $0x288] sm:$0xf]
  %v865 = vld [vmem:[%s1 + $0x298] sm:$0xf]
  %v866 = vld [vmem:[%s1 + $0x2a8] sm:$0xf]
  %v867 = vld [vmem:[%s1 + $0x2b8] sm:$0xf]
  %v868 = vld [vmem:[%s1 + $0x2c8] sm:$0xf]
  %v869 = vld [vmem:[%s1 + $0x2d8] sm:$0xf]
  %v870 = vld [vmem:[%s1 + $0x2e8] sm:$0xf]
  %v871 = vld [vmem:[%s1 + $0x2f8] sm:$0xf]
  %v888 = vunpack.c.l.b16 %v856
  %v889 = vunpack.c.l.b16 %v857
  %v890 = vunpack.c.l.b16 %v858
  %v891 = vunpack.c.l.b16 %v859
  %v892 = vunpack.c.l.b16 %v860
  %v893 = vunpack.c.l.b16 %v861
  %v894 = vunpack.c.l.b16 %v862
  %v895 = vunpack.c.l.b16 %v863
  %v896 = vunpack.c.l.b16 %v864
  %v897 = vunpack.c.l.b16 %v865
  %v898 = vunpack.c.l.b16 %v866
  %v899 = vunpack.c.l.b16 %v867
  %v900 = vunpack.c.l.b16 %v868
  %v901 = vunpack.c.l.b16 %v869
  %v902 = vunpack.c.l.b16 %v870
  %v903 = vunpack.c.l.b16 %v871
  %v904 = vpack.c.b16 %v889, %v888
  %v905 = vpack.c.b16 %v891, %v890
  %v906 = vpack.c.b16 %v893, %v892
  %v907 = vpack.c.b16 %v895, %v894
  %v908 = vpack.c.b16 %v897, %v896
  %v909 = vpack.c.b16 %v899, %v898
  %v910 = vpack.c.b16 %v901, %v900
  %v911 = vpack.c.b16 %v903, %v902
  %920 = vmatprep.subr.bf16.mxu0 0
  %921 = vmatpush1.bf16.msra.mxu0 %v904
  %922 = vmatprep.subr.bf16.mxu0 0
  %923 = vmatpush1.bf16.msra.mxu0 %v905
  %924 = vmatprep.subr.bf16.mxu0 0
  %925 = vmatpush1.bf16.msra.mxu0 %v906
  %926 = vmatprep.subr.bf16.mxu0 0
  %927 = vmatpush1.bf16.msra.mxu0 %v907
  %928 = vmatprep.subr.bf16.mxu0 0
  %929 = vmatpush1.bf16.msra.mxu0 %v908
  %930 = vmatprep.subr.bf16.mxu0 0
  %931 = vmatpush1.bf16.msra.mxu0 %v909
  %932 = vmatprep.subr.bf16.mxu0 0
  %933 = vmatpush1.bf16.msra.mxu0 %v910
  %934 = vmatprep.subr.bf16.mxu0 0
  %935 = vmatpush1.bf16.msra.mxu0 %v911
  %936 = vmatprep.subr.bf16.mxu0 0
  %937 = vmatpush1.bf16.msra.mxu0 0
  %938 = vmatprep.subr.bf16.mxu0 0
  %939 = vmatpush1.bf16.msra.mxu0 0
  %940 = vmatprep.subr.bf16.mxu0 0
  %941 = vmatpush1.bf16.msra.mxu0 0
  %942 = vmatprep.subr.bf16.mxu0 0
  %943 = vmatpush1.bf16.msra.mxu0 0
  %944 = vmatprep.subr.bf16.mxu0 0
  %945 = vmatpush1.bf16.msra.mxu0 0
  %946 = vmatprep.subr.bf16.mxu0 0
  %947 = vmatpush1.bf16.msra.mxu0 0
  %948 = vmatprep.subr.bf16.mxu0 0
  %949 = vmatpush1.bf16.msra.mxu0 0
  %950 = vmatprep.subr.bf16.mxu0 0
  %951 = vmatpush1.bf16.msra.mxu0 0
  %952 = vmatprep.mubr.bf16.mxu0 0
  %953 = vmatmul.mubr.bf16.gmra.mrb[0].mxu0 %v640
  %v954 = vpop.f32.mrb[0].mxu0
  %v955 = vadd.f32 0.0, %v954
  %v956 = vpop.f32.mrb[0].mxu0
  %v957 = vpop.f32.mrb[0].mxu0
  %v958 = vpop.f32.mrb[0].mxu0
  %959 = vdwg.mxu0
  %v960 = vadd.f32 %v855, %v955
  %v961 = vld [vmem:[%s1 + $0x20c] sm:$0xf]
  %v962 = vld [vmem:[%s1 + $0x21c] sm:$0xf]
  %v963 = vld [vmem:[%s1 + $0x22c] sm:$0xf]
  %v964 = vld [vmem:[%s1 + $0x23c] sm:$0xf]
  %v965 = vld [vmem:[%s1 + $0x24c] sm:$0xf]
  %v966 = vld [vmem:[%s1 + $0x25c] sm:$0xf]
  %v967 = vld [vmem:[%s1 + $0x26c] sm:$0xf]
  %v968 = vld [vmem:[%s1 + $0x27c] sm:$0xf]
  %v969 = vld [vmem:[%s1 + $0x28c] sm:$0xf]
  %v970 = vld [vmem:[%s1 + $0x29c] sm:$0xf]
  %v971 = vld [vmem:[%s1 + $0x2ac] sm:$0xf]
  %v972 = vld [vmem:[%s1 + $0x2bc] sm:$0xf]
  %v973 = vld [vmem:[%s1 + $0x2cc] sm:$0xf]
  %v974 = vld [vmem:[%s1 + $0x2dc] sm:$0xf]
  %v975 = vld [vmem:[%s1 + $0x2ec] sm:$0xf]
  %v976 = vld [vmem:[%s1 + $0x2fc] sm:$0xf]
  %v993 = vunpack.c.l.b16 %v961
  %v994 = vunpack.c.l.b16 %v962
  %v995 = vunpack.c.l.b16 %v963
  %v996 = vunpack.c.l.b16 %v964
  %v997 = vunpack.c.l.b16 %v965
  %v998 = vunpack.c.l.b16 %v966
  %v999 = vunpack.c.l.b16 %v967
  %v1000 = vunpack.c.l.b16 %v968
  %v1001 = vunpack.c.l.b16 %v969
  %v1002 = vunpack.c.l.b16 %v970
  %v1003 = vunpack.c.l.b16 %v971
  %v1004 = vunpack.c.l.b16 %v972
  %v1005 = vunpack.c.l.b16 %v973
  %v1006 = vunpack.c.l.b16 %v974
  %v1007 = vunpack.c.l.b16 %v975
  %v1008 = vunpack.c.l.b16 %v976
  %v1009 = vpack.c.b16 %v994, %v993
  %v1010 = vpack.c.b16 %v996, %v995
  %v1011 = vpack.c.b16 %v998, %v997
  %v1012 = vpack.c.b16 %v1000, %v999
  %v1013 = vpack.c.b16 %v1002, %v1001
  %v1014 = vpack.c.b16 %v1004, %v1003
  %v1015 = vpack.c.b16 %v1006, %v1005
  %v1016 = vpack.c.b16 %v1008, %v1007
  %1025 = vmatprep.subr.bf16.mxu0 0
  %1026 = vmatpush1.bf16.msra.mxu0 %v1009
  %1027 = vmatprep.subr.bf16.mxu0 0
  %1028 = vmatpush1.bf16.msra.mxu0 %v1010
  %1029 = vmatprep.subr.bf16.mxu0 0
  %1030 = vmatpush1.bf16.msra.mxu0 %v1011
  %1031 = vmatprep.subr.bf16.mxu0 0
  %1032 = vmatpush1.bf16.msra.mxu0 %v1012
  %1033 = vmatprep.subr.bf16.mxu0 0
  %1034 = vmatpush1.bf16.msra.mxu0 %v1013
  %1035 = vmatprep.subr.bf16.mxu0 0
  %1036 = vmatpush1.bf16.msra.mxu0 %v1014
  %1037 = vmatprep.subr.bf16.mxu0 0
  %1038 = vmatpush1.bf16.msra.mxu0 %v1015
  %1039 = vmatprep.subr.bf16.mxu0 0
  %1040 = vmatpush1.bf16.msra.mxu0 %v1016
  %1041 = vmatprep.subr.bf16.mxu0 0
  %1042 = vmatpush1.bf16.msra.mxu0 0
  %1043 = vmatprep.subr.bf16.mxu0 0
  %1044 = vmatpush1.bf16.msra.mxu0 0
  %1045 = vmatprep.subr.bf16.mxu0 0
  %1046 = vmatpush1.bf16.msra.mxu0 0
  %1047 = vmatprep.subr.bf16.mxu0 0
  %1048 = vmatpush1.bf16.msra.mxu0 0
  %1049 = vmatprep.subr.bf16.mxu0 0
  %1050 = vmatpush1.bf16.msra.mxu0 0
  %1051 = vmatprep.subr.bf16.mxu0 0
  %1052 = vmatpush1.bf16.msra.mxu0 0
  %1053 = vmatprep.subr.bf16.mxu0 0
  %1054 = vmatpush1.bf16.msra.mxu0 0
  %1055 = vmatprep.subr.bf16.mxu0 0
  %1056 = vmatpush1.bf16.msra.mxu0 0
  %1057 = vmatprep.mubr.bf16.mxu0 0
  %1058 = vmatmul.mubr.bf16.gmra.mrb[0].mxu0 %v641
  %v1059 = vpop.f32.mrb[0].mxu0
  %v1060 = vadd.f32 0.0, %v1059
  %v1061 = vpop.f32.mrb[0].mxu0
  %v1062 = vpop.f32.mrb[0].mxu0
  %v1063 = vpop.f32.mrb[0].mxu0
  %1064 = vdwg.mxu0
  %v1065 = vadd.f32 %v960, %v1060
  %v1066 = vlaneseq
  %v1067 = vshrl.u32 %v1066, 7
  %v1068 = vsub.s32 5, %v1067
  %v1069 = vrot.slane %v14, %v1068
  %vm1070 = vcmp.gt.f32.partialorder %v1069, 0.5
  %v1071 = vadd.f32 %v1065, 2.7182817
  %v1072 = vmul.f32 %v1071, 1.442695
  %v1073 = vpow.pop %v1072
  %v1074 = vsel %vm1070, %v1073, %v1065
  %1075 = vst [vmem:[%s2] sm:$0xff] %v1074
  // Predicated region
  $region10: #{time_frequency_cnn_forward.1} parent=0 // pred_check
    _
  $region11: #{time_frequency_cnn_forward.1} parent=0 // pred_check_branch
    %1077 = sbr.rel (0) target = $region13
  $region12: #{time_frequency_cnn_forward.1} parent=0 // pred_region
    _
  $region13: #{time_frequency_cnn_forward.1} parent=0 // pred_fallthru
    _
  // Predicated region
  $region14: #{time_frequency_cnn_forward.1} parent=0 // pred_check
    _
  $region15: #{time_frequency_cnn_forward.1} parent=0 // pred_check_branch
    %1079 = sbr.rel (0) target = $region17
  $region16: #{time_frequency_cnn_forward.1} parent=0 // pred_region
    _
  $region17: #{time_frequency_cnn_forward.1} parent=0 // pred_fallthru
    _

</llo_original>
